<compile_context>
chip_gen: v5e
topology: v5e:2x2
jax: 0.10.0
libtpu: 0.0.40
codegen_flags: <defaults>
</compile_context>

<pallas_src>
import jax
import jax.numpy as jnp
from jax.experimental import pallas as pl
from jax.experimental.pallas import tpu as pltpu

_LANE = 128
_SUBLANE = 8


def _round_up(x, m):
    return ((x + m - 1) // m) * m


# ---------------------------------------------------------------------------
# Hardware query (guarded: perf heuristic only, never a correctness dependency)
# ---------------------------------------------------------------------------
def _tpu_vmem_and_cores():
    physical = 64 * 2 ** 20          # assume the smallest (v7x per-TC VMEM) if unknown
    cores = 1
    try:
        info = pltpu.get_tpu_info()
        physical = int(getattr(info, "vmem_capacity_bytes", physical) or physical)
        for attr in ("num_cores", "core_count", "num_tensorcores", "tensorcore_count"):
            val = getattr(info, attr, None)
            if val:
                cores = int(val)
                break
    except Exception:
        pass
    return physical, cores


# ---------------------------------------------------------------------------
# Per-tile compute
# ---------------------------------------------------------------------------
def _rowwise_softmax_argmax(x, out_dtype):
    """Full-row softmax + first-max argmax for a (rows, C) tile (C on lanes)."""
    c = x.shape[-1]
    m = jnp.max(x, axis=-1, keepdims=True)                        # raw dtype (exact)
    e = jnp.exp(x.astype(jnp.float32) - m.astype(jnp.float32))    # f32 only for exp/sum
    denom = jnp.sum(e, axis=-1, keepdims=True)
    score = (e * pl.reciprocal(denom, approx=False)).astype(out_dtype)
    lane = jax.lax.broadcasted_iota(jnp.int32, x.shape, x.ndim - 1)
    cand = jnp.where(x == m, lane, c)                             # first max on ties
    pred_col = jnp.min(cand, axis=-1, keepdims=True).astype(jnp.int32)   # (rows, 1)
    return score, pred_col


def _packed_softmax_argmax(x, c, k, out_dtype):
    """Lane-packed tile: each (row, 128-lane) vreg row carries k = 128//c logical
    rows of c classes.  Segmented softmax + first-max argmax per c-wide segment."""
    rows, lanes = x.shape
    steps = c.bit_length() - 1                                    # log2(c)
    lane = jax.lax.broadcasted_iota(jnp.int32, (rows, lanes), 1)

    def seg_allreduce(v, combine):
        # XOR-butterfly all-reduce within aligned power-of-2 lane segments of width c.
        # Two pltpu.rolls (XLU slot, idle here) + one select + one combine per step;
        # wrapped lanes are never selected because segments are power-of-2 aligned.
        out = v
        s = 1
        for _ in range(steps):
            fwd = pltpu.roll(out, shift=lanes - s, axis=1)        # value from lane + s
            bwd = pltpu.roll(out, shift=s, axis=1)                # value from lane - s
            partner = jnp.where((lane & s) == 0, fwd, bwd)
            out = combine(out, partner)
            s *= 2
        return out

    m = seg_allreduce(x, jnp.maximum)                             # raw dtype (exact)
    e = jnp.exp(x.astype(jnp.float32) - m.astype(jnp.float32))
    denom = seg_allreduce(e, jnp.add)
    score = (e * pl.reciprocal(denom, approx=False)).astype(out_dtype)

    pos = lane & (c - 1)                                          # class index in segment
    cand = jnp.where(x == m, pos, c)                              # first max on ties
    cand = seg_allreduce(cand, jnp.minimum)                       # broadcast to segment

    # Compact (rows, k*c) -> (rows, k): one-hot selector matmul on the otherwise-idle
    # MXU.  Values are small integers, so the result is exact at any matmul precision.
    sel = (jax.lax.broadcasted_iota(jnp.int32, (lanes, k), 0)
           == jax.lax.broadcasted_iota(jnp.int32, (lanes, k), 1) * c).astype(jnp.float32)
    pred = jnp.dot(cand.astype(jnp.float32), sel,
                   preferred_element_type=jnp.float32).astype(jnp.int32)    # (rows, k)
    return score, pred


def _build_kernel(num_heads, packed, c, k):
    def kernel(*refs):
        logit_refs = refs[:num_heads]
        out_refs = refs[num_heads:]
        for h in range(num_heads):
            score_ref = out_refs[2 * h]
            pred_ref = out_refs[2 * h + 1]
            x = logit_refs[h][...]
            if packed:
                score, pred = _packed_softmax_argmax(x, c, k, score_ref.dtype)
                score_ref[...] = score
                pred_ref[...] = pred
            else:
                score, pred_col = _rowwise_softmax_argmax(x, score_ref.dtype)
                score_ref[...] = score
                # lane-dense (1, rows) store: full-width vector stores instead of
                # width-1 masked stores.  TODO(synk): re-audit this transpose
                # lowering on v7x (chunk it if it becomes per-8-row rotate chains).
                pred_ref[...] = jnp.transpose(pred_col, (1, 0))
    return kernel


# ---------------------------------------------------------------------------
# Tiling / sizing
# ---------------------------------------------------------------------------
def _pick_block_rows(n_rows, granule, per_row_bytes, data_budget, cores, requested):
    if requested is not None:
        br = max(1, min(int(requested), n_rows))
        if br < n_rows:
            br = min(_round_up(br, granule), n_rows)
        return br
    cap = data_budget // max(per_row_bytes, 1)
    if cap >= n_rows:
        br = n_rows
    elif cap >= granule:
        br = (cap // granule) * granule
    else:
        return None                          # even a minimal block busts the budget
    # Megacore (v7x): prefer >= 2 row blocks per TensorCore so no core is left with
    # only a heavily-masked tail block.  Single-core chips keep the biggest block.
    if cores > 1 and n_rows > granule and br > granule:
        per_core = min(_round_up(pl.cdiv(n_rows, 2 * cores), granule), n_rows)
        br = max(min(br, per_core), granule)
    return br


def _run_heads_pallas(heads, block_rows=None):
    """One fused pallas_call over H same-shape heads.  Returns None to request a
    plain-XLA fallback (shape cannot be tiled within the VMEM budget)."""
    n, c = heads[0].shape
    dtype = heads[0].dtype
    isz = jnp.dtype(dtype).itemsize
    num_heads = len(heads)

    physical, cores = _tpu_vmem_and_cores()
    data_budget = max(min(physical // 4, 24 * 2 ** 20), 4 * 2 ** 20)
    vmem_limit = max(min((physical * 3) // 4, 64 * 2 ** 20), 32 * 2 ** 20)

    # Lane packing: only when the packed width is exactly 128 lanes (c | 128) and the
    # row count reshapes evenly; otherwise run the plain row-per-sublane layout.
    packed = (c < _LANE) and (_LANE % c == 0) and (_LANE // c > 1) and (n % (_LANE // c) == 0)
    if packed:
        k = _LANE // c
        n_rows, lanes, granule = n // k, _LANE, _SUBLANE
    else:
        k = 1
        n_rows, lanes, granule = n, c, _LANE   # 128-granule keeps the (1, br) pred tile legal

    # Per-row VMEM accounting at *padded* lane width, including f32/int32 temporaries.
    lanes_p = _round_up(lanes, _LANE)
    per_row = 2 * lanes_p * isz               # input tile, double-buffered
    per_row += 2 * lanes_p * isz              # score tile, double-buffered
    per_row += 3 * lanes_p * 4                # f32 upcast/exp + int32 iota/cand temporaries
    per_row += 2 * _LANE * 4 if packed else 2 * _SUBLANE * 4    # pred tile (padded)
    per_row *= num_heads

    br = _pick_block_rows(n_rows, granule, per_row, data_budget, cores, block_rows)
    if br is None:
        return None
    step_bytes = per_row * _round_up(br, _SUBLANE)
    if step_bytes > (vmem_limit * 4) // 5:     # leave headroom for compiler scratch
        return None

    grid = (pl.cdiv(n_rows, br),)
    inputs = [h.reshape(n_rows, lanes) for h in heads] if packed else list(heads)

    in_specs = [pl.BlockSpec((br, lanes), lambda i: (i, 0)) for _ in range(num_heads)]
    out_shape, out_specs = [], []
    for _ in range(num_heads):
        out_shape.append(jax.ShapeDtypeStruct((n_rows, lanes), dtype))
        out_specs.append(pl.BlockSpec((br, lanes), lambda i: (i, 0)))
        if packed:
            out_shape.append(jax.ShapeDtypeStruct((n_rows, k), jnp.int32))
            out_specs.append(pl.BlockSpec((br, k), lambda i: (i, 0)))
        else:
            out_shape.append(jax.ShapeDtypeStruct((1, n_rows), jnp.int32))
            out_specs.append(pl.BlockSpec((1, br), lambda i: (0, i)))

    kernel = _build_kernel(num_heads, packed, c, k)
    outs = pl.pallas_call(
        kernel,
        out_shape=tuple(out_shape),
        grid=grid,
        in_specs=in_specs,
        out_specs=tuple(out_specs),
        compiler_params=pltpu.CompilerParams(
            dimension_semantics=("parallel",),
            vmem_limit_bytes=int(vmem_limit),
        ),
    )(*inputs)

    scores, preds = [], []
    for h in range(num_heads):
        s, p = outs[2 * h], outs[2 * h + 1]
        if packed:
            scores.append(s.reshape(n, c))
            preds.append(p.reshape(n))
        else:
            scores.append(s)
            preds.append(p.reshape(n))
    return scores, preds


# ---------------------------------------------------------------------------
# Public API (mirrors BaseClsPostProcess.get_test_output / forward in eval mode)
# ---------------------------------------------------------------------------
def _xla_softmax_argmax(logit):
    score = jax.nn.softmax(logit, axis=1)
    pred = jnp.argmax(logit, axis=1).astype(jnp.int32)
    return score, pred


def _cls_postprocess_heads(heads, block_rows=None, min_pallas_elements=0):
    n, c = heads[0].shape
    if n * c < min_pallas_elements:
        # launch + pipeline warm-up dominates for tiny heads: let XLA fuse it
        pairs = [_xla_softmax_argmax(h) for h in heads]
        return [s for s, _ in pairs], [p for _, p in pairs]
    res = _run_heads_pallas(heads, block_rows)
    if res is None:
        # TODO(synk): class-dim-tiled online-softmax kernel; plain XLA for now.
        pairs = [_xla_softmax_argmax(h) for h in heads]
        return [s for s, _ in pairs], [p for _, p in pairs]
    return res


def cls_postprocess_single(logits, block_rows=None, min_pallas_elements=0):
    scores, preds = _cls_postprocess_heads([logits], block_rows, min_pallas_elements)
    return scores[0], preds[0]


def base_cls_postprocess_forward(inputs, block_rows=None, min_pallas_elements=1 << 17):
    """Eval-mode forward of BaseClsPostProcess.

    inputs: {'logits': Array[N, C]  or  list of Array[N, C]}
    returns: {'preds': ..., 'scores': ...}  mirroring get_test_output.
    """
    logits = inputs["logits"]
    if isinstance(logits, (list, tuple)):
        heads = list(logits)
        keys = {(tuple(h.shape), jnp.dtype(h.dtype).name) for h in heads}
        if heads and len(keys) == 1:
            # one fused pallas_call over all heads (no concat / re-slicing copies)
            scores, preds = _cls_postprocess_heads(heads, block_rows, min_pallas_elements)
        else:
            scores, preds = [], []
            for h in heads:
                s, p = _cls_postprocess_heads([h], block_rows, min_pallas_elements)
                scores.append(s[0])
                preds.append(p[0])
        return {"preds": list(preds), "scores": list(scores)}
    scores, preds = _cls_postprocess_heads([logits], block_rows, min_pallas_elements)
    return {"preds": preds[0], "scores": scores[0]}


# ---------------------------------------------------------------------------
# Demo / self-test
# ---------------------------------------------------------------------------
if __name__ == "__main__":
    key = jax.random.PRNGKey(0)
    k1, k2, k3, k4, k5 = jax.random.split(key, 5)

    def check(scores, preds, logit, tag):
        scores = jax.block_until_ready(scores)
        preds = jax.block_until_ready(preds)
        s_ref = jax.nn.softmax(logit, axis=1)
        p_ref = jnp.argmax(logit, axis=1).astype(jnp.int32)
        assert jnp.allclose(scores, s_ref, atol=1e-5), f"{tag}: score mismatch"
        assert jnp.array_equal(preds, p_ref), f"{tag}: pred mismatch"

    # 1) packed path (C=16 -> 8 rows per 128-lane group), single head
    logits_a = jax.random.normal(k1, (64, 16), dtype=jnp.float32)
    out = base_cls_postprocess_forward({"logits": logits_a}, min_pallas_elements=0)
    check(out["scores"], out["preds"], logits_a, "single packed")

    # 2) multi-head list (same shape) -> one fused pallas_call, no concat
    logits_list = [logits_a, jax.random.normal(k2, (64, 16), dtype=jnp.float32)]
    out = base_cls_postprocess_forward({"logits": logits_list}, min_pallas_elements=0)
    for s, p, l in zip(out["scores"], out["preds"], logits_list):
        check(s, p, l, "multi head")

    # 3) packed path with grid > 1 and a masked tail block (200 rows -> 25 packed rows)
    logits_tall = jax.random.normal(k3, (200, 16), dtype=jnp.float32)
    out = base_cls_postprocess_forward({"logits": logits_tall}, block_rows=8,
                                       min_pallas_elements=0)
    check(out["scores"], out["preds"], logits_tall, "packed tiled")

    # 4) unpacked path (C=12 does not divide 128), single full block
    logits_b = jax.random.normal(k4, (40, 12), dtype=jnp.float32)
    out = base_cls_postprocess_forward({"logits": logits_b}, min_pallas_elements=0)
    check(out["scores"], out["preds"], logits_b, "unpacked small")

    # 5) unpacked path with row grid > 1 and the lane-dense (1, N) pred tiling
    logits_c = jax.random.normal(k5, (300, 20), dtype=jnp.float32)
    out = base_cls_postprocess_forward({"logits": logits_c}, block_rows=128,
                                       min_pallas_elements=0)
    check(out["scores"], out["preds"], logits_c, "unpacked tiled")

    print("KERNEL_OK")
</pallas_src>

<mosaic_0001>
module attributes {stable_mosaic.version = 11 : i64} {
  func.func @kernel(%arg0: i32, %arg1: memref<8x128xf32, #tpu.memory_space<vmem>>, %arg2: memref<8x128xf32, #tpu.memory_space<vmem>>, %arg3: memref<8x8xi32, #tpu.memory_space<vmem>>) attributes {dimension_semantics = [#tpu.dimension_semantics<parallel>], iteration_bounds = array<i64: 1>, scalar_prefetch = 0 : i64, scratch_operands = 0 : i64, tpu.core_type = #tpu.core_type<tc>, window_params = [{transform_indices = @transform_0, window_bounds = array<i64: 8, 128>}, {transform_indices = @transform_1, window_bounds = array<i64: 8, 128>}, {transform_indices = @transform_2, window_bounds = array<i64: 8, 8>}]} {
    %c0 = arith.constant 0 : index
    %c0_0 = arith.constant 0 : index
    %0 = vector.load %arg1[%c0, %c0_0] : memref<8x128xf32, #tpu.memory_space<vmem>>, vector<8x128xf32>
    %1 = tpu.iota {dimensions = array<i32: 1>} : vector<8x128xi32>
    %c127_i32 = arith.constant 127 : i32
    %2 = tpu.dynamic_rotate %0 by %c127_i32 dim 1 : vector<8x128xf32>, i32 -> vector<8x128xf32>
    %c1_i32 = arith.constant 1 : i32
    %3 = tpu.dynamic_rotate %0 by %c1_i32 dim 1 : vector<8x128xf32>, i32 -> vector<8x128xf32>
    %c1_i32_1 = arith.constant 1 : i32
    %4 = vector.broadcast %c1_i32_1 : i32 to vector<8x128xi32>
    %5 = arith.andi %1, %4 : vector<8x128xi32>
    %c0_i32 = arith.constant 0 : i32
    %6 = vector.broadcast %c0_i32 : i32 to vector<8x128xi32>
    %7 = arith.cmpi eq, %5, %6 : vector<8x128xi32>
    %8 = arith.select %7, %2, %3 : vector<8x128xi1>, vector<8x128xf32>
    %9 = arith.maximumf %0, %8 : vector<8x128xf32>
    %c126_i32 = arith.constant 126 : i32
    %10 = tpu.dynamic_rotate %9 by %c126_i32 dim 1 : vector<8x128xf32>, i32 -> vector<8x128xf32>
    %c2_i32 = arith.constant 2 : i32
    %11 = tpu.dynamic_rotate %9 by %c2_i32 dim 1 : vector<8x128xf32>, i32 -> vector<8x128xf32>
    %c2_i32_2 = arith.constant 2 : i32
    %12 = vector.broadcast %c2_i32_2 : i32 to vector<8x128xi32>
    %13 = arith.andi %1, %12 : vector<8x128xi32>
    %c0_i32_3 = arith.constant 0 : i32
    %14 = vector.broadcast %c0_i32_3 : i32 to vector<8x128xi32>
    %15 = arith.cmpi eq, %13, %14 : vector<8x128xi32>
    %16 = arith.select %15, %10, %11 : vector<8x128xi1>, vector<8x128xf32>
    %17 = arith.maximumf %9, %16 : vector<8x128xf32>
    %c124_i32 = arith.constant 124 : i32
    %18 = tpu.dynamic_rotate %17 by %c124_i32 dim 1 : vector<8x128xf32>, i32 -> vector<8x128xf32>
    %c4_i32 = arith.constant 4 : i32
    %19 = tpu.dynamic_rotate %17 by %c4_i32 dim 1 : vector<8x128xf32>, i32 -> vector<8x128xf32>
    %c4_i32_4 = arith.constant 4 : i32
    %20 = vector.broadcast %c4_i32_4 : i32 to vector<8x128xi32>
    %21 = arith.andi %1, %20 : vector<8x128xi32>
    %c0_i32_5 = arith.constant 0 : i32
    %22 = vector.broadcast %c0_i32_5 : i32 to vector<8x128xi32>
    %23 = arith.cmpi eq, %21, %22 : vector<8x128xi32>
    %24 = arith.select %23, %18, %19 : vector<8x128xi1>, vector<8x128xf32>
    %25 = arith.maximumf %17, %24 : vector<8x128xf32>
    %c120_i32 = arith.constant 120 : i32
    %26 = tpu.dynamic_rotate %25 by %c120_i32 dim 1 : vector<8x128xf32>, i32 -> vector<8x128xf32>
    %c8_i32 = arith.constant 8 : i32
    %27 = tpu.dynamic_rotate %25 by %c8_i32 dim 1 : vector<8x128xf32>, i32 -> vector<8x128xf32>
    %c8_i32_6 = arith.constant 8 : i32
    %28 = vector.broadcast %c8_i32_6 : i32 to vector<8x128xi32>
    %29 = arith.andi %1, %28 : vector<8x128xi32>
    %c0_i32_7 = arith.constant 0 : i32
    %30 = vector.broadcast %c0_i32_7 : i32 to vector<8x128xi32>
    %31 = arith.cmpi eq, %29, %30 : vector<8x128xi32>
    %32 = arith.select %31, %26, %27 : vector<8x128xi1>, vector<8x128xf32>
    %33 = arith.maximumf %25, %32 : vector<8x128xf32>
    %34 = arith.subf %0, %33 : vector<8x128xf32>
    %35 = math.exp %34 : vector<8x128xf32>
    %c127_i32_8 = arith.constant 127 : i32
    %36 = tpu.dynamic_rotate %35 by %c127_i32_8 dim 1 : vector<8x128xf32>, i32 -> vector<8x128xf32>
    %c1_i32_9 = arith.constant 1 : i32
    %37 = tpu.dynamic_rotate %35 by %c1_i32_9 dim 1 : vector<8x128xf32>, i32 -> vector<8x128xf32>
    %c1_i32_10 = arith.constant 1 : i32
    %38 = vector.broadcast %c1_i32_10 : i32 to vector<8x128xi32>
    %39 = arith.andi %1, %38 : vector<8x128xi32>
    %c0_i32_11 = arith.constant 0 : i32
    %40 = vector.broadcast %c0_i32_11 : i32 to vector<8x128xi32>
    %41 = arith.cmpi eq, %39, %40 : vector<8x128xi32>
    %42 = arith.select %41, %36, %37 : vector<8x128xi1>, vector<8x128xf32>
    %43 = arith.addf %35, %42 : vector<8x128xf32>
    %c126_i32_12 = arith.constant 126 : i32
    %44 = tpu.dynamic_rotate %43 by %c126_i32_12 dim 1 : vector<8x128xf32>, i32 -> vector<8x128xf32>
    %c2_i32_13 = arith.constant 2 : i32
    %45 = tpu.dynamic_rotate %43 by %c2_i32_13 dim 1 : vector<8x128xf32>, i32 -> vector<8x128xf32>
    %c2_i32_14 = arith.constant 2 : i32
    %46 = vector.broadcast %c2_i32_14 : i32 to vector<8x128xi32>
    %47 = arith.andi %1, %46 : vector<8x128xi32>
    %c0_i32_15 = arith.constant 0 : i32
    %48 = vector.broadcast %c0_i32_15 : i32 to vector<8x128xi32>
    %49 = arith.cmpi eq, %47, %48 : vector<8x128xi32>
    %50 = arith.select %49, %44, %45 : vector<8x128xi1>, vector<8x128xf32>
    %51 = arith.addf %43, %50 : vector<8x128xf32>
    %c124_i32_16 = arith.constant 124 : i32
    %52 = tpu.dynamic_rotate %51 by %c124_i32_16 dim 1 : vector<8x128xf32>, i32 -> vector<8x128xf32>
    %c4_i32_17 = arith.constant 4 : i32
    %53 = tpu.dynamic_rotate %51 by %c4_i32_17 dim 1 : vector<8x128xf32>, i32 -> vector<8x128xf32>
    %c4_i32_18 = arith.constant 4 : i32
    %54 = vector.broadcast %c4_i32_18 : i32 to vector<8x128xi32>
    %55 = arith.andi %1, %54 : vector<8x128xi32>
    %c0_i32_19 = arith.constant 0 : i32
    %56 = vector.broadcast %c0_i32_19 : i32 to vector<8x128xi32>
    %57 = arith.cmpi eq, %55, %56 : vector<8x128xi32>
    %58 = arith.select %57, %52, %53 : vector<8x128xi1>, vector<8x128xf32>
    %59 = arith.addf %51, %58 : vector<8x128xf32>
    %c120_i32_20 = arith.constant 120 : i32
    %60 = tpu.dynamic_rotate %59 by %c120_i32_20 dim 1 : vector<8x128xf32>, i32 -> vector<8x128xf32>
    %c8_i32_21 = arith.constant 8 : i32
    %61 = tpu.dynamic_rotate %59 by %c8_i32_21 dim 1 : vector<8x128xf32>, i32 -> vector<8x128xf32>
    %c8_i32_22 = arith.constant 8 : i32
    %62 = vector.broadcast %c8_i32_22 : i32 to vector<8x128xi32>
    %63 = arith.andi %1, %62 : vector<8x128xi32>
    %c0_i32_23 = arith.constant 0 : i32
    %64 = vector.broadcast %c0_i32_23 : i32 to vector<8x128xi32>
    %65 = arith.cmpi eq, %63, %64 : vector<8x128xi32>
    %66 = arith.select %65, %60, %61 : vector<8x128xi1>, vector<8x128xf32>
    %67 = arith.addf %59, %66 : vector<8x128xf32>
    %68 = tpu.reciprocal %67 : vector<8x128xf32> -> vector<8x128xf32>
    %69 = arith.mulf %35, %68 : vector<8x128xf32>
    %c15_i32 = arith.constant 15 : i32
    %70 = vector.broadcast %c15_i32 : i32 to vector<8x128xi32>
    %71 = arith.andi %1, %70 : vector<8x128xi32>
    %72 = arith.cmpf oeq, %0, %33 : vector<8x128xf32>
    %c16_i32 = arith.constant 16 : i32
    %73 = vector.broadcast %c16_i32 : i32 to vector<8x128xi32>
    %74 = arith.select %72, %71, %73 : vector<8x128xi1>, vector<8x128xi32>
    %c127_i32_24 = arith.constant 127 : i32
    %75 = tpu.dynamic_rotate %74 by %c127_i32_24 dim 1 : vector<8x128xi32>, i32 -> vector<8x128xi32>
    %c1_i32_25 = arith.constant 1 : i32
    %76 = tpu.dynamic_rotate %74 by %c1_i32_25 dim 1 : vector<8x128xi32>, i32 -> vector<8x128xi32>
    %c1_i32_26 = arith.constant 1 : i32
    %77 = vector.broadcast %c1_i32_26 : i32 to vector<8x128xi32>
    %78 = arith.andi %1, %77 : vector<8x128xi32>
    %c0_i32_27 = arith.constant 0 : i32
    %79 = vector.broadcast %c0_i32_27 : i32 to vector<8x128xi32>
    %80 = arith.cmpi eq, %78, %79 : vector<8x128xi32>
    %81 = arith.select %80, %75, %76 : vector<8x128xi1>, vector<8x128xi32>
    %82 = arith.minsi %74, %81 : vector<8x128xi32>
    %c126_i32_28 = arith.constant 126 : i32
    %83 = tpu.dynamic_rotate %82 by %c126_i32_28 dim 1 : vector<8x128xi32>, i32 -> vector<8x128xi32>
    %c2_i32_29 = arith.constant 2 : i32
    %84 = tpu.dynamic_rotate %82 by %c2_i32_29 dim 1 : vector<8x128xi32>, i32 -> vector<8x128xi32>
    %c2_i32_30 = arith.constant 2 : i32
    %85 = vector.broadcast %c2_i32_30 : i32 to vector<8x128xi32>
    %86 = arith.andi %1, %85 : vector<8x128xi32>
    %c0_i32_31 = arith.constant 0 : i32
    %87 = vector.broadcast %c0_i32_31 : i32 to vector<8x128xi32>
    %88 = arith.cmpi eq, %86, %87 : vector<8x128xi32>
    %89 = arith.select %88, %83, %84 : vector<8x128xi1>, vector<8x128xi32>
    %90 = arith.minsi %82, %89 : vector<8x128xi32>
    %c124_i32_32 = arith.constant 124 : i32
    %91 = tpu.dynamic_rotate %90 by %c124_i32_32 dim 1 : vector<8x128xi32>, i32 -> vector<8x128xi32>
    %c4_i32_33 = arith.constant 4 : i32
    %92 = tpu.dynamic_rotate %90 by %c4_i32_33 dim 1 : vector<8x128xi32>, i32 -> vector<8x128xi32>
    %c4_i32_34 = arith.constant 4 : i32
    %93 = vector.broadcast %c4_i32_34 : i32 to vector<8x128xi32>
    %94 = arith.andi %1, %93 : vector<8x128xi32>
    %c0_i32_35 = arith.constant 0 : i32
    %95 = vector.broadcast %c0_i32_35 : i32 to vector<8x128xi32>
    %96 = arith.cmpi eq, %94, %95 : vector<8x128xi32>
    %97 = arith.select %96, %91, %92 : vector<8x128xi1>, vector<8x128xi32>
    %98 = arith.minsi %90, %97 : vector<8x128xi32>
    %c120_i32_36 = arith.constant 120 : i32
    %99 = tpu.dynamic_rotate %98 by %c120_i32_36 dim 1 : vector<8x128xi32>, i32 -> vector<8x128xi32>
    %c8_i32_37 = arith.constant 8 : i32
    %100 = tpu.dynamic_rotate %98 by %c8_i32_37 dim 1 : vector<8x128xi32>, i32 -> vector<8x128xi32>
    %c8_i32_38 = arith.constant 8 : i32
    %101 = vector.broadcast %c8_i32_38 : i32 to vector<8x128xi32>
    %102 = arith.andi %1, %101 : vector<8x128xi32>
    %c0_i32_39 = arith.constant 0 : i32
    %103 = vector.broadcast %c0_i32_39 : i32 to vector<8x128xi32>
    %104 = arith.cmpi eq, %102, %103 : vector<8x128xi32>
    %105 = arith.select %104, %99, %100 : vector<8x128xi1>, vector<8x128xi32>
    %106 = arith.minsi %98, %105 : vector<8x128xi32>
    %107 = tpu.iota {dimensions = array<i32: 0>} : vector<128x8xi32>
    %108 = tpu.iota {dimensions = array<i32: 1>} : vector<128x8xi32>
    %c16_i32_40 = arith.constant 16 : i32
    %109 = vector.broadcast %c16_i32_40 : i32 to vector<128x8xi32>
    %110 = arith.muli %108, %109 : vector<128x8xi32>
    %111 = arith.cmpi eq, %107, %110 : vector<128x8xi32>
    %112 = arith.extui %111 : vector<128x8xi1> to vector<128x8xi32>
    %113 = arith.sitofp %112 : vector<128x8xi32> to vector<128x8xf32>
    %114 = arith.sitofp %106 : vector<8x128xi32> to vector<8x128xf32>
    %cst = arith.constant dense<0.000000e+00> : vector<8x8xf32>
    %115 = tpu.matmul %114, %113, %cst {dimension_numbers = #tpu.dot_dimension_numbers<[1], [0], [0], [1], [0, 0, 1, 1], [], []>} : vector<8x128xf32>, vector<128x8xf32>, vector<8x8xf32> -> vector<8x8xf32>
    %116 = arith.fptosi %115 : vector<8x8xf32> to vector<8x8xi32>
    %c0_41 = arith.constant 0 : index
    %c0_42 = arith.constant 0 : index
    %117 = vector.load %arg2[%c0_41, %c0_42] : memref<8x128xf32, #tpu.memory_space<vmem>>, vector<8x128xf32>
    tpu.vector_store %arg2[%c0_41, %c0_42], %69 {strides = array<i32>} : memref<8x128xf32, #tpu.memory_space<vmem>>, vector<8x128xf32>,
    %c0_43 = arith.constant 0 : index
    %c0_44 = arith.constant 0 : index
    %118 = vector.load %arg3[%c0_43, %c0_44] : memref<8x8xi32, #tpu.memory_space<vmem>>, vector<8x8xi32>
    tpu.vector_store %arg3[%c0_43, %c0_44], %116 {strides = array<i32>} : memref<8x8xi32, #tpu.memory_space<vmem>>, vector<8x8xi32>,
    return
  }
  func.func @transform_0(%arg0: i32) -> (i32, i32) {
    %c0_i32 = arith.constant 0 : i32
    %c0_i32_0 = arith.constant 0 : i32
    return %arg0, %c0_i32 : i32, i32
  }
  func.func @transform_1(%arg0: i32) -> (i32, i32) {
    %c0_i32 = arith.constant 0 : i32
    %c0_i32_0 = arith.constant 0 : i32
    return %arg0, %c0_i32 : i32, i32
  }
  func.func @transform_2(%arg0: i32) -> (i32, i32) {
    %c0_i32 = arith.constant 0 : i32
    %c0_i32_0 = arith.constant 0 : i32
    return %arg0, %c0_i32 : i32, i32
  }
}

</mosaic_0001>

<llo_original>
// kernel: tpu_custom_call.1
$region0: #{tpu_custom_call.1}
  #allocation0 [shape = 'u32[]', space=smem, size = 0x4, offset = 0x4, fixed_abs, tag = 'smem constant byte address 0x4 - core index']
  #allocation1 [shape = 'u32[72,128]{1,0:T(1,128)}', space=vmem, size = 0x9000, scoped, tag = 'internal scratch']
  %s0 = inlined_call_operand.hbm [shape: f32[8,128], index: 0, kind: input, shape index: {}]
  %s1 = inlined_call_operand.hbm [shape: f32[8,128], index: 1, kind: output, shape index: {0}]
  %s2 = inlined_call_operand.hbm [shape: s32[8,8], index: 2, kind: output, shape index: {1}]
  %3 = xla_tuple %s1, %s2
  %s4 = sld [smem:[#allocation0]]
  $region26: #{tpu_custom_call.1} parent=0
    _
  %s6 = ssub.s32 1, %s4
  %s7 = scalar_select 0, %s6, %s4
  $region1: #{tpu_custom_call.1} parent=0
    #allocation2 [shape = 'u8[4096]{0}', space=vmem, size = 0x1000, scoped, tag = 'input window, operand 0, single buffered']
    #allocation3 [shape = 's32[1]{0}', space=sflag, size = 0x4, scoped, tag = 'scoped memory for tpu_custom_call.1']
    #allocation4 [shape = 's32[1]{0}', space=sflag, size = 0x4, scoped, tag = 'scoped memory for tpu_custom_call.1']
    #allocation5 [shape = 'u8[4096]{0}', space=vmem, size = 0x1000, scoped, tag = 'output window, operand 0, single buffered']
    #allocation6 [shape = 'u8[4096]{0}', space=vmem, size = 0x1000, scoped, tag = 'output window, operand 1, single buffered']
    #allocation7 [shape = 's32[1]{0}', space=sflag, size = 0x4, scoped, tag = 'scoped memory for tpu_custom_call.1']
    %8 = vsyncpa [#allocation3], 0
    %9 = vsyncpa [#allocation4], 0
    %10 = vsyncpa [#allocation7], 0
    // Predicated region
    $region2: #{tpu_custom_call.1} parent=1 // pred_check
      _
    $region3: #{tpu_custom_call.1} parent=1 // pred_check_branch
      %12 = sbr.rel (0) target = $region5
    $region4: #{tpu_custom_call.1} parent=1 // pred_region
      %14 = vsyncadd [#allocation3], 0
      %s16 = sshll.u32 %s0, 4
      %s17 = int_to_ptr.hbm [resolvable:$true] %s16
      %s18 = sshll.u32 [#allocation2], 4
      %s19 = int_to_ptr.vmem [resolvable:$true] %s18
      %21 = dma.hbm_to_vmem [thread:$0]  %s17, 128, %s19, [#allocation3]
    $region5: #{tpu_custom_call.1} parent=1 // pred_fallthru
      _
    // Predicated region
    $region6: #{tpu_custom_call.1} parent=1 // pred_check
      _
    $region7: #{tpu_custom_call.1} parent=1 // pred_check_branch
      %23 = sbr.rel (0) target = $region9
    $region8: #{tpu_custom_call.1} parent=1 // pred_region
      %25 = dma.done [#allocation3], 128
    $region9: #{tpu_custom_call.1} parent=1 // pred_fallthru
      _
    %v26 = vld [vmem:[#allocation2] sm:$0xff]
    %v27 = vlaneseq
    %v28 = vand.u32 %v27, 127
    %29 = vrot.lane.b32.xlu0 %v26, 127
    %v30 = vpop.permute.xlu0 %29
    %31 = vrot.lane.b32.xlu0 %v26, 1
    %v32 = vpop.permute.xlu0 %31
    %v33 = vand.u32 %v28, 1
    %vm34 = vcmp.eq.s32.totalorder %v33, 0
    %v35 = vsel %vm34, %v30, %v32
    %v36 = vmax.f32 %v26, %v35
    %37 = vrot.lane.b32.xlu0 %v36, 126
    %v38 = vpop.permute.xlu0 %37
    %39 = vrot.lane.b32.xlu0 %v36, 2
    %v40 = vpop.permute.xlu0 %39
    %v41 = vand.u32 %v28, 2
    %vm42 = vcmp.eq.s32.totalorder %v41, 0
    %v43 = vsel %vm42, %v38, %v40
    %v44 = vmax.f32 %v36, %v43
    %45 = vrot.lane.b32.xlu0 %v44, 124
    %v46 = vpop.permute.xlu0 %45
    %47 = vrot.lane.b32.xlu0 %v44, 4
    %v48 = vpop.permute.xlu0 %47
    %v49 = vand.u32 %v28, 4
    %vm50 = vcmp.eq.s32.totalorder %v49, 0
    %v51 = vsel %vm50, %v46, %v48
    %v52 = vmax.f32 %v44, %v51
    %53 = vrot.lane.b32.xlu0 %v52, 120
    %v54 = vpop.permute.xlu0 %53
    %55 = vrot.lane.b32.xlu0 %v52, 8
    %v56 = vpop.permute.xlu0 %55
    %v57 = vand.u32 %v28, 8
    %vm58 = vcmp.eq.s32.totalorder %v57, 0
    %v59 = vsel %vm58, %v54, %v56
    %v60 = vmax.f32 %v52, %v59
    %v61 = vsub.f32 %v26, %v60
    %v62 = vmul.f32 %v61, 1.442695
    %v63 = vpow.pop %v62
    %64 = vrot.lane.b32.xlu0 %v63, 127
    %v65 = vpop.permute.xlu0 %64
    %66 = vrot.lane.b32.xlu0 %v63, 1
    %v67 = vpop.permute.xlu0 %66
    %v68 = vsel %vm34, %v65, %v67
    %v69 = vadd.f32 %v63, %v68
    %70 = vrot.lane.b32.xlu0 %v69, 126
    %v71 = vpop.permute.xlu0 %70
    %72 = vrot.lane.b32.xlu0 %v69, 2
    %v73 = vpop.permute.xlu0 %72
    %v74 = vsel %vm42, %v71, %v73
    %v75 = vadd.f32 %v69, %v74
    %76 = vrot.lane.b32.xlu0 %v75, 124
    %v77 = vpop.permute.xlu0 %76
    %78 = vrot.lane.b32.xlu0 %v75, 4
    %v79 = vpop.permute.xlu0 %78
    %v80 = vsel %vm50, %v77, %v79
    %v81 = vadd.f32 %v75, %v80
    %82 = vrot.lane.b32.xlu0 %v81, 120
    %v83 = vpop.permute.xlu0 %82
    %84 = vrot.lane.b32.xlu0 %v81, 8
    %v85 = vpop.permute.xlu0 %84
    %v86 = vsel %vm58, %v83, %v85
    %v87 = vadd.f32 %v81, %v86
    %v88 = vrcp.pop %v87
    %v89 = vmul.f32 %v87, %v88
    %v90 = vsub.f32 1.0, %v89
    %v91 = vmul.f32 %v88, %v90
    %v92 = vadd.f32 %v88, %v91
    %vm93 = vweird.f32 %v87
    %vm94 = vweird.f32 %v88
    %vm95 = vmor %vm93, %vm94
    %v96 = vsel %vm95, %v88, %v92
    %v97 = vand.u32 2147483647, %v87
    %vm98 = vcmp.eq.f32.partialorder %v97, 8.507059e+37
    %v99 = vand.u32 %v87, 2147483648
    %v100 = vor.u32 1.1754944e-38, %v99
    %v101 = vsel %vm98, %v100, %v96
    %v102 = vmul.f32 %v63, %v101
    %v103 = vand.u32 %v28, 15
    %vm104 = vcmp.eq.f32.partialorder %v26, %v60
    %v105 = vsel %vm104, %v103, 16
    %106 = vrot.lane.b32.xlu0 %v105, 127
    %v107 = vpop.permute.xlu0 %106
    %108 = vrot.lane.b32.xlu0 %v105, 1
    %v109 = vpop.permute.xlu0 %108
    %v110 = vsel %vm34, %v107, %v109
    %vm111 = vcmp.lt.s32.totalorder %v105, %v110
    %v112 = vsel %vm111, %v105, %v110
    %113 = vrot.lane.b32.xlu0 %v112, 126
    %v114 = vpop.permute.xlu0 %113
    %115 = vrot.lane.b32.xlu0 %v112, 2
    %v116 = vpop.permute.xlu0 %115
    %v117 = vsel %vm42, %v114, %v116
    %vm118 = vcmp.lt.s32.totalorder %v112, %v117
    %v119 = vsel %vm118, %v112, %v117
    %120 = vrot.lane.b32.xlu0 %v119, 124
    %v121 = vpop.permute.xlu0 %120
    %122 = vrot.lane.b32.xlu0 %v119, 4
    %v123 = vpop.permute.xlu0 %122
    %v124 = vsel %vm50, %v121, %v123
    %vm125 = vcmp.lt.s32.totalorder %v119, %v124
    %v126 = vsel %vm125, %v119, %v124
    %127 = vrot.lane.b32.xlu0 %v126, 120
    %v128 = vpop.permute.xlu0 %127
    %129 = vrot.lane.b32.xlu0 %v126, 8
    %v130 = vpop.permute.xlu0 %129
    %v131 = vsel %vm58, %v128, %v130
    %vm132 = vcmp.lt.s32.totalorder %v126, %v131
    %v133 = vsel %vm132, %v126, %v131
    %v134 = vlaneseq
    %v135 = vshrl.u32 %v134, 7
    %v136 = vadd.s32 %v135, 8
    %v137 = vadd.s32 %v135, 16
    %v138 = vadd.s32 %v135, 24
    %v139 = vadd.s32 %v135, 32
    %v140 = vadd.s32 %v135, 40
    %v141 = vadd.s32 %v135, 48
    %v142 = vadd.s32 %v135, 56
    %v143 = vadd.s32 %v135, 64
    %v144 = vadd.s32 %v135, 72
    %v145 = vadd.s32 %v135, 80
    %v146 = vadd.s32 %v135, 88
    %v147 = vadd.s32 %v135, 96
    %v148 = vadd.s32 %v135, 104
    %v149 = vadd.s32 %v135, 112
    %v150 = vadd.s32 %v135, 120
    %v151 = vmul.u32 %v28, 16
    %vm152 = vcmp.eq.s32.totalorder %v135, %v151
    %vm153 = vcmp.eq.s32.totalorder %v136, %v151
    %vm154 = vcmp.eq.s32.totalorder %v137, %v151
    %vm155 = vcmp.eq.s32.totalorder %v138, %v151
    %vm156 = vcmp.eq.s32.totalorder %v139, %v151
    %vm157 = vcmp.eq.s32.totalorder %v140, %v151
    %vm158 = vcmp.eq.s32.totalorder %v141, %v151
    %vm159 = vcmp.eq.s32.totalorder %v142, %v151
    %vm160 = vcmp.eq.s32.totalorder %v143, %v151
    %vm161 = vcmp.eq.s32.totalorder %v144, %v151
    %vm162 = vcmp.eq.s32.totalorder %v145, %v151
    %vm163 = vcmp.eq.s32.totalorder %v146, %v151
    %vm164 = vcmp.eq.s32.totalorder %v147, %v151
    %vm165 = vcmp.eq.s32.totalorder %v148, %v151
    %vm166 = vcmp.eq.s32.totalorder %v149, %v151
    %vm167 = vcmp.eq.s32.totalorder %v150, %v151
    %v168 = vsel %vm152, 1, 0
    %v169 = vsel %vm153, 1, 0
    %v170 = vsel %vm154, 1, 0
    %v171 = vsel %vm155, 1, 0
    %v172 = vsel %vm156, 1, 0
    %v173 = vsel %vm157, 1, 0
    %v174 = vsel %vm158, 1, 0
    %v175 = vsel %vm159, 1, 0
    %v176 = vsel %vm160, 1, 0
    %v177 = vsel %vm161, 1, 0
    %v178 = vsel %vm162, 1, 0
    %v179 = vsel %vm163, 1, 0
    %v180 = vsel %vm164, 1, 0
    %v181 = vsel %vm165, 1, 0
    %v182 = vsel %vm166, 1, 0
    %v183 = vsel %vm167, 1, 0
    %v184 = vcvt.s32.f32 %v168
    %v185 = vcvt.s32.f32 %v169
    %v186 = vcvt.s32.f32 %v170
    %v187 = vcvt.s32.f32 %v171
    %v188 = vcvt.s32.f32 %v172
    %v189 = vcvt.s32.f32 %v173
    %v190 = vcvt.s32.f32 %v174
    %v191 = vcvt.s32.f32 %v175
    %v192 = vcvt.s32.f32 %v176
    %v193 = vcvt.s32.f32 %v177
    %v194 = vcvt.s32.f32 %v178
    %v195 = vcvt.s32.f32 %v179
    %v196 = vcvt.s32.f32 %v180
    %v197 = vcvt.s32.f32 %v181
    %v198 = vcvt.s32.f32 %v182
    %v199 = vcvt.s32.f32 %v183
    %v200 = vcvt.s32.f32 %v133
    %201 = vmatpush.msra.mxu0 %v199
    %202 = vmatpush.msra.mxu0 %v198
    %203 = vmatpush.msra.mxu0 %v197
    %204 = vmatpush.msra.mxu0 %v196
    %205 = vmatpush.msra.mxu0 %v195
    %206 = vmatpush.msra.mxu0 %v194
    %207 = vmatpush.msra.mxu0 %v193
    %208 = vmatpush.msra.mxu0 %v192
    %209 = vmatpush.msra.mxu0 %v191
    %210 = vmatpush.msra.mxu0 %v190
    %211 = vmatpush.msra.mxu0 %v189
    %212 = vmatpush.msra.mxu0 %v188
    %213 = vmatpush.msra.mxu0 %v187
    %214 = vmatpush.msra.mxu0 %v186
    %215 = vmatpush.msra.mxu0 %v185
    %216 = vmatpush.msra.mxu0 %v184
    %217 = vmatmul.f32.gmra.mxu0 %v200
    %v218 = vpop.f32.mrf.mxu0
    %v219 = vadd.f32 0.0, %v218
    %220 = vdwg.mxu0
    %v221 = vcvt.f32.s32.to.zero.pseudo %v219
    %222 = vst [vmem:[#allocation5] sm:$0xff] %v102
    %vm223 = vcmask 64512
    %224 = vst.msk [vmem:[#allocation6] sm:$0xff] %vm223, %v221
    // Predicated region
    $region10: #{tpu_custom_call.1} parent=1 // pred_check
      _
    $region11: #{tpu_custom_call.1} parent=1 // pred_check_branch
      %226 = sbr.rel (0) target = $region13
    $region12: #{tpu_custom_call.1} parent=1 // pred_region
      %228 = vsyncadd [#allocation4], 0
      %s230 = sshll.u32 [#allocation5], 4
      %s231 = int_to_ptr.vmem [resolvable:$true] %s230
      %s232 = sshll.u32 %s1, 4
      %s233 = int_to_ptr.hbm [resolvable:$true] %s232
      %235 = dma.vmem_to_hbm [thread:$0]  %s231, 128, %s233, [#allocation4]
    $region13: #{tpu_custom_call.1} parent=1 // pred_fallthru
      _
    // Predicated region
    $region14: #{tpu_custom_call.1} parent=1 // pred_check
      _
    $region15: #{tpu_custom_call.1} parent=1 // pred_check_branch
      %237 = sbr.rel (0) target = $region17
    $region16: #{tpu_custom_call.1} parent=1 // pred_region
      %239 = vsyncadd [#allocation7], 0
      %s241 = sshll.u32 [#allocation6], 4
      %s242 = int_to_ptr.vmem [resolvable:$true] %s241
      %s243 = sshll.u32 %s2, 4
      %s244 = int_to_ptr.hbm [resolvable:$true] %s243
      %246 = dma.vmem_to_hbm [thread:$0]  %s242, 128, %s244, [#allocation7]
    $region17: #{tpu_custom_call.1} parent=1 // pred_fallthru
      _
    // Predicated region
    $region18: #{tpu_custom_call.1} parent=1 // pred_check
      _
    $region19: #{tpu_custom_call.1} parent=1 // pred_check_branch
      %248 = sbr.rel (0) target = $region21
    $region20: #{tpu_custom_call.1} parent=1 // pred_region
      %250 = dma.done [#allocation4], 128
    $region21: #{tpu_custom_call.1} parent=1 // pred_fallthru
      _
    // Predicated region
    $region22: #{tpu_custom_call.1} parent=1 // pred_check
      _
    $region23: #{tpu_custom_call.1} parent=1 // pred_check_branch
      %252 = sbr.rel (0) target = $region25
    $region24: #{tpu_custom_call.1} parent=1 // pred_region
      %254 = dma.done [#allocation7], 128
    $region25: #{tpu_custom_call.1} parent=1 // pred_fallthru
      _
    %255 = vsyncpa [#allocation3], 1
    %256 = vsyncpa [#allocation4], 1
    %257 = vsyncpa [#allocation7], 1

</llo_original>
